<compile_context>
chip_gen: v7x
topology: tpu7x:2x2x1
jax: 0.10.0
libtpu: 0.0.40
codegen_flags: <defaults>
</compile_context>

<pallas_src>
import jax
import jax.numpy as jnp
from jax.experimental import pallas as pl
from jax.experimental.pallas import tpu as pltpu


def _round_up(n, m):
    return ((n + m - 1) // m) * m


def qnet_kernel(x_ref, w1_ref, b1_ref, w2_ref, b2_ref, w3_ref, b3_ref, o_ref):
    # ---- fc1 on the VPU: K=4 contraction as 4 broadcast-multiply-accumulates ----
    x = x_ref[...]                              # [TB, 4]  f32
    w1 = w1_ref[...].astype(jnp.float32)        # [4, 128] (stored bf16)
    acc = x[:, 0:1] * w1[0:1, :]
    for k in range(1, 4):                       # static unroll, tiny trip count
        acc = acc + x[:, k:k + 1] * w1[k:k + 1, :]
    h1 = jnp.maximum(acc + b1_ref[...], 0.0)    # f32 bias add + ReLU (v5e-friendly)

    # ---- fc2 on the MXU: bf16 operands, f32 accumulation ----
    h2 = jnp.dot(h1.astype(jnp.bfloat16), w2_ref[...],
                 preferred_element_type=jnp.float32)
    h2 = jnp.maximum(h2 + b2_ref[...], 0.0)

    # ---- fc3 on the MXU: output lane-dense [TB, 128] (cols 2..127 are zero pads) ----
    o = jnp.dot(h2.astype(jnp.bfloat16), w3_ref[...],
                preferred_element_type=jnp.float32)
    o_ref[...] = (o + b3_ref[...]).astype(o_ref.dtype)


def qnet_forward(x, params, *, block_b=256):
    """x: [B, 4] float32 -> [B, 2] float32 Q-values."""
    w1, b1, w2, b2, w3, b3 = params
    B = x.shape[0]

    # Batch tile: multiple of 8 sublanes; pad B up to a whole number of tiles.
    TB = min(_round_up(block_b, 8), _round_up(B, 8))
    Bp = _round_up(B, TB)
    if Bp != B:
        x = jnp.pad(x, ((0, Bp - B), (0, 0)))

    pinned = lambda a: pl.BlockSpec(a.shape, lambda i: (0,) * a.ndim)  # VMEM-resident

    out = pl.pallas_call(
        qnet_kernel,
        out_shape=jax.ShapeDtypeStruct((Bp, 128), jnp.float32),
        grid=(Bp // TB,),
        in_specs=[
            pl.BlockSpec((TB, 4), lambda i: (i, 0)),   # x: streamed per batch tile
            pinned(w1), pinned(b1),
            pinned(w2), pinned(b2),
            pinned(w3), pinned(b3),
        ],
        out_specs=pl.BlockSpec((TB, 128), lambda i: (i, 0)),
        compiler_params=pltpu.CompilerParams(
            dimension_semantics=("parallel",)),        # v7x: split batch over 2 TCs
    )(x, w1, b1, w2, b2, w3, b3)

    return out[:B, :2]


def init_qnet_params(key):
    """PyTorch nn.Linear-style init (U[-1/sqrt(fan_in), 1/sqrt(fan_in)]).
    Weights stored bf16 ([in, out]); biases f32 ([1, out]); fc3 padded to 128 lanes."""
    def linear_init(k, fan_in, fan_out):
        kw, kb = jax.random.split(k)
        bound = 1.0 / float(fan_in) ** 0.5
        w = jax.random.uniform(kw, (fan_in, fan_out), jnp.float32, -bound, bound)
        b = jax.random.uniform(kb, (1, fan_out), jnp.float32, -bound, bound)
        return w, b

    k1, k2, k3 = jax.random.split(key, 3)
    w1, b1 = linear_init(k1, 4, 128)
    w2, b2 = linear_init(k2, 128, 128)
    w3, b3 = linear_init(k3, 128, 2)
    # Lane-dense fc3: pad output dim 2 -> 128 with zeros; wrapper slices [:, :2].
    w3 = jnp.pad(w3, ((0, 0), (0, 126)))
    b3 = jnp.pad(b3, ((0, 0), (0, 126)))
    return (w1.astype(jnp.bfloat16), b1,
            w2.astype(jnp.bfloat16), b2,
            w3.astype(jnp.bfloat16), b3)


def qnet_reference(x, params):
    """Pure-JAX reference mirroring the kernel's precision choices (bf16 weights,
    bf16 MXU operands, f32 accumulation / elementwise)."""
    w1, b1, w2, b2, w3, b3 = params
    hi = jax.lax.Precision.HIGHEST
    h1 = jnp.maximum(
        jnp.dot(x, w1.astype(jnp.float32), precision=hi) + b1, 0.0)
    h2 = jnp.maximum(
        jnp.dot(h1.astype(jnp.bfloat16).astype(jnp.float32),
                w2.astype(jnp.float32), precision=hi) + b2, 0.0)
    o = jnp.dot(h2.astype(jnp.bfloat16).astype(jnp.float32),
                w3.astype(jnp.float32), precision=hi) + b3
    return o[:, :2]


if __name__ == "__main__":
    key = jax.random.PRNGKey(0)
    kx, kx2, kp = jax.random.split(key, 3)

    params = init_qnet_params(kp)

    # Small CartPole-style batch.
    B = 8
    x = jax.random.normal(kx, (B, 4), jnp.float32)
    out = jax.block_until_ready(qnet_forward(x, params))
    ref = qnet_reference(x, params)
    assert out.shape == (B, 2), out.shape
    assert jnp.allclose(out, ref, atol=1e-4, rtol=1e-4), "mismatch vs reference (B=8)"

    # Larger, non-multiple batch exercising the batch grid + padding path.
    B2 = 300
    x2 = jax.random.normal(kx2, (B2, 4), jnp.float32)
    out2 = jax.block_until_ready(qnet_forward(x2, params, block_b=128))
    ref2 = qnet_reference(x2, params)
    assert out2.shape == (B2, 2), out2.shape
    assert jnp.allclose(out2, ref2, atol=1e-4, rtol=1e-4), "mismatch vs reference (B=300)"

    print("KERNEL_OK")
</pallas_src>

<mosaic_0001>
module attributes {stable_mosaic.version = 11 : i64} {
  func.func @qnet_kernel(%arg0: i32, %arg1: memref<8x4xf32, #tpu.memory_space<vmem>>, %arg2: memref<4x128xbf16, #tpu.memory_space<vmem>>, %arg3: memref<1x128xf32, #tpu.memory_space<vmem>>, %arg4: memref<128x128xbf16, #tpu.memory_space<vmem>>, %arg5: memref<1x128xf32, #tpu.memory_space<vmem>>, %arg6: memref<128x128xbf16, #tpu.memory_space<vmem>>, %arg7: memref<1x128xf32, #tpu.memory_space<vmem>>, %arg8: memref<8x128xf32, #tpu.memory_space<vmem>>) attributes {dimension_semantics = [#tpu.dimension_semantics<parallel>], iteration_bounds = array<i64: 1>, scalar_prefetch = 0 : i64, scratch_operands = 0 : i64, tpu.core_type = #tpu.core_type<tc>, window_params = [{transform_indices = @transform_0, window_bounds = array<i64: 8, 4>}, {pipeline_mode = #tpu.pipeline_mode<synchronous>, transform_indices = @transform_1, window_bounds = array<i64: 4, 128>}, {pipeline_mode = #tpu.pipeline_mode<synchronous>, transform_indices = @transform_2, window_bounds = array<i64: 1, 128>}, {pipeline_mode = #tpu.pipeline_mode<synchronous>, transform_indices = @transform_3, window_bounds = array<i64: 128, 128>}, {pipeline_mode = #tpu.pipeline_mode<synchronous>, transform_indices = @transform_4, window_bounds = array<i64: 1, 128>}, {pipeline_mode = #tpu.pipeline_mode<synchronous>, transform_indices = @transform_5, window_bounds = array<i64: 128, 128>}, {pipeline_mode = #tpu.pipeline_mode<synchronous>, transform_indices = @transform_6, window_bounds = array<i64: 1, 128>}, {transform_indices = @transform_7, window_bounds = array<i64: 8, 128>}]} {
    %c0 = arith.constant 0 : index
    %c0_0 = arith.constant 0 : index
    %0 = vector.load %arg1[%c0, %c0_0] : memref<8x4xf32, #tpu.memory_space<vmem>>, vector<8x4xf32>
    %c0_1 = arith.constant 0 : index
    %c0_2 = arith.constant 0 : index
    %1 = vector.load %arg2[%c0_1, %c0_2] : memref<4x128xbf16, #tpu.memory_space<vmem>>, vector<4x128xbf16>
    %2 = arith.extf %1 : vector<4x128xbf16> to vector<4x128xf32>
    %3 = vector.extract_strided_slice %0 {offsets = [0, 0], sizes = [8, 1], strides = [1, 1]} : vector<8x4xf32> to vector<8x1xf32>
    %4 = vector.extract_strided_slice %2 {offsets = [0, 0], sizes = [1, 128], strides = [1, 1]} : vector<4x128xf32> to vector<1x128xf32>
    %5 = vector.broadcast %3 : vector<8x1xf32> to vector<8x128xf32>
    %6 = vector.broadcast %4 : vector<1x128xf32> to vector<8x128xf32>
    %7 = arith.mulf %5, %6 : vector<8x128xf32>
    %8 = vector.extract_strided_slice %0 {offsets = [0, 1], sizes = [8, 1], strides = [1, 1]} : vector<8x4xf32> to vector<8x1xf32>
    %9 = vector.extract_strided_slice %2 {offsets = [1, 0], sizes = [1, 128], strides = [1, 1]} : vector<4x128xf32> to vector<1x128xf32>
    %10 = vector.broadcast %8 : vector<8x1xf32> to vector<8x128xf32>
    %11 = vector.broadcast %9 : vector<1x128xf32> to vector<8x128xf32>
    %12 = arith.mulf %10, %11 : vector<8x128xf32>
    %13 = arith.addf %7, %12 : vector<8x128xf32>
    %14 = vector.extract_strided_slice %0 {offsets = [0, 2], sizes = [8, 1], strides = [1, 1]} : vector<8x4xf32> to vector<8x1xf32>
    %15 = vector.extract_strided_slice %2 {offsets = [2, 0], sizes = [1, 128], strides = [1, 1]} : vector<4x128xf32> to vector<1x128xf32>
    %16 = vector.broadcast %14 : vector<8x1xf32> to vector<8x128xf32>
    %17 = vector.broadcast %15 : vector<1x128xf32> to vector<8x128xf32>
    %18 = arith.mulf %16, %17 : vector<8x128xf32>
    %19 = arith.addf %13, %18 : vector<8x128xf32>
    %20 = vector.extract_strided_slice %0 {offsets = [0, 3], sizes = [8, 1], strides = [1, 1]} : vector<8x4xf32> to vector<8x1xf32>
    %21 = vector.extract_strided_slice %2 {offsets = [3, 0], sizes = [1, 128], strides = [1, 1]} : vector<4x128xf32> to vector<1x128xf32>
    %22 = vector.broadcast %20 : vector<8x1xf32> to vector<8x128xf32>
    %23 = vector.broadcast %21 : vector<1x128xf32> to vector<8x128xf32>
    %24 = arith.mulf %22, %23 : vector<8x128xf32>
    %25 = arith.addf %19, %24 : vector<8x128xf32>
    %c0_3 = arith.constant 0 : index
    %c0_4 = arith.constant 0 : index
    %26 = vector.load %arg3[%c0_3, %c0_4] : memref<1x128xf32, #tpu.memory_space<vmem>>, vector<1x128xf32>
    %27 = vector.broadcast %26 : vector<1x128xf32> to vector<8x128xf32>
    %28 = arith.addf %25, %27 : vector<8x128xf32>
    %cst = arith.constant 0.000000e+00 : f32
    %29 = vector.broadcast %cst : f32 to vector<8x128xf32>
    %30 = arith.maximumf %28, %29 : vector<8x128xf32>
    %31 = arith.truncf %30 : vector<8x128xf32> to vector<8x128xbf16>
    %c0_5 = arith.constant 0 : index
    %c0_6 = arith.constant 0 : index
    %32 = vector.load %arg4[%c0_5, %c0_6] : memref<128x128xbf16, #tpu.memory_space<vmem>>, vector<128x128xbf16>
    %cst_7 = arith.constant dense<0.000000e+00> : vector<8x128xf32>
    %33 = tpu.matmul %31, %32, %cst_7 {dimension_numbers = #tpu.dot_dimension_numbers<[1], [0], [0], [1], [0, 0, 1, 1], [], []>} : vector<8x128xbf16>, vector<128x128xbf16>, vector<8x128xf32> -> vector<8x128xf32>
    %c0_8 = arith.constant 0 : index
    %c0_9 = arith.constant 0 : index
    %34 = vector.load %arg5[%c0_8, %c0_9] : memref<1x128xf32, #tpu.memory_space<vmem>>, vector<1x128xf32>
    %35 = vector.broadcast %34 : vector<1x128xf32> to vector<8x128xf32>
    %36 = arith.addf %33, %35 : vector<8x128xf32>
    %cst_10 = arith.constant 0.000000e+00 : f32
    %37 = vector.broadcast %cst_10 : f32 to vector<8x128xf32>
    %38 = arith.maximumf %36, %37 : vector<8x128xf32>
    %39 = arith.truncf %38 : vector<8x128xf32> to vector<8x128xbf16>
    %c0_11 = arith.constant 0 : index
    %c0_12 = arith.constant 0 : index
    %40 = vector.load %arg6[%c0_11, %c0_12] : memref<128x128xbf16, #tpu.memory_space<vmem>>, vector<128x128xbf16>
    %cst_13 = arith.constant dense<0.000000e+00> : vector<8x128xf32>
    %41 = tpu.matmul %39, %40, %cst_13 {dimension_numbers = #tpu.dot_dimension_numbers<[1], [0], [0], [1], [0, 0, 1, 1], [], []>} : vector<8x128xbf16>, vector<128x128xbf16>, vector<8x128xf32> -> vector<8x128xf32>
    %c0_14 = arith.constant 0 : index
    %c0_15 = arith.constant 0 : index
    %42 = vector.load %arg7[%c0_14, %c0_15] : memref<1x128xf32, #tpu.memory_space<vmem>>, vector<1x128xf32>
    %43 = vector.broadcast %42 : vector<1x128xf32> to vector<8x128xf32>
    %44 = arith.addf %41, %43 : vector<8x128xf32>
    %c0_16 = arith.constant 0 : index
    %c0_17 = arith.constant 0 : index
    %45 = vector.load %arg8[%c0_16, %c0_17] : memref<8x128xf32, #tpu.memory_space<vmem>>, vector<8x128xf32>
    tpu.vector_store %arg8[%c0_16, %c0_17], %44 {strides = array<i32>} : memref<8x128xf32, #tpu.memory_space<vmem>>, vector<8x128xf32>,
    return
  }
  func.func @transform_0(%arg0: i32) -> (i32, i32) {
    %c0_i32 = arith.constant 0 : i32
    %c0_i32_0 = arith.constant 0 : i32
    return %arg0, %c0_i32 : i32, i32
  }
  func.func @transform_1(%arg0: i32) -> (i32, i32) {
    %c0_i32 = arith.constant 0 : i32
    %c0_i32_0 = arith.constant 0 : i32
    %c0_i32_1 = arith.constant 0 : i32
    return %c0_i32, %c0_i32_0 : i32, i32
  }
  func.func @transform_2(%arg0: i32) -> (i32, i32) {
    %c0_i32 = arith.constant 0 : i32
    %c0_i32_0 = arith.constant 0 : i32
    %c0_i32_1 = arith.constant 0 : i32
    return %c0_i32, %c0_i32_0 : i32, i32
  }
  func.func @transform_3(%arg0: i32) -> (i32, i32) {
    %c0_i32 = arith.constant 0 : i32
    %c0_i32_0 = arith.constant 0 : i32
    %c0_i32_1 = arith.constant 0 : i32
    return %c0_i32, %c0_i32_0 : i32, i32
  }
  func.func @transform_4(%arg0: i32) -> (i32, i32) {
    %c0_i32 = arith.constant 0 : i32
    %c0_i32_0 = arith.constant 0 : i32
    %c0_i32_1 = arith.constant 0 : i32
    return %c0_i32, %c0_i32_0 : i32, i32
  }
  func.func @transform_5(%arg0: i32) -> (i32, i32) {
    %c0_i32 = arith.constant 0 : i32
    %c0_i32_0 = arith.constant 0 : i32
    %c0_i32_1 = arith.constant 0 : i32
    return %c0_i32, %c0_i32_0 : i32, i32
  }
  func.func @transform_6(%arg0: i32) -> (i32, i32) {
    %c0_i32 = arith.constant 0 : i32
    %c0_i32_0 = arith.constant 0 : i32
    %c0_i32_1 = arith.constant 0 : i32
    return %c0_i32, %c0_i32_0 : i32, i32
  }
  func.func @transform_7(%arg0: i32) -> (i32, i32) {
    %c0_i32 = arith.constant 0 : i32
    %c0_i32_0 = arith.constant 0 : i32
    return %arg0, %c0_i32 : i32, i32
  }
}

</mosaic_0001>

<llo_original>
// kernel: tpu_custom_call.1
$region0: #{tpu_custom_call.1}
  #allocation0 [shape = 'u32[]', space=smem, size = 0x4, offset = 0x4, fixed_abs, tag = 'smem constant byte address 0x4 - core index']
  #allocation1 [shape = 'u32[144,128]{1,0:T(1,128)}', space=vmem, size = 0x12000, scoped, tag = 'internal scratch']
  %s0 = inlined_call_operand.vmem [shape: f32[8,4], index: 0, kind: input, shape index: {}]
  %s1 = inlined_call_operand.vmem [shape: bf16[4,128], index: 1, kind: input, shape index: {}]
  %s2 = inlined_call_operand.vmem [shape: f32[1,128], index: 2, kind: input, shape index: {}]
  %s3 = inlined_call_operand.hbm [shape: bf16[128,128], index: 3, kind: input, shape index: {}]
  %s4 = inlined_call_operand.vmem [shape: f32[1,128], index: 4, kind: input, shape index: {}]
  %s5 = inlined_call_operand.hbm [shape: bf16[128,128], index: 5, kind: input, shape index: {}]
  %s6 = inlined_call_operand.vmem [shape: f32[1,128], index: 6, kind: input, shape index: {}]
  %s7 = inlined_call_operand.hbm [shape: f32[8,128], index: 7, kind: output, shape index: {}]
  %s8 = sld [smem:[#allocation0]]
  $region46: #{tpu_custom_call.1} parent=0
    _
  %s10 = ssub.s32 1, %s8
  %s11 = scalar_select 0, %s10, %s8
  $region1: #{tpu_custom_call.1} parent=0
    #allocation2 [shape = 'u8[32768]{0}', space=vmem, size = 0x8000, scoped, tag = 'input window, operand 3, single buffered']
    #allocation3 [shape = 's32[1]{0}', space=sflag, size = 0x4, scoped, tag = 'scoped memory for tpu_custom_call.1']
    #allocation4 [shape = 's32[1]{0}', space=sflag, size = 0x4, scoped, tag = 'scoped memory for tpu_custom_call.1']
    #allocation5 [shape = 'u8[32768]{0}', space=vmem, size = 0x8000, scoped, tag = 'input window, operand 5, single buffered']
    #allocation6 [shape = 's32[1]{0}', space=sflag, size = 0x4, scoped, tag = 'scoped memory for tpu_custom_call.1']
    #allocation7 [shape = 'u8[4096]{0}', space=vmem, size = 0x1000, scoped, tag = 'output window, operand 0, single buffered']
    %12 = vsyncpa [#allocation3], 0
    %13 = vsyncpa [#allocation6], 0
    %14 = vsyncpa [#allocation4], 0
    // Predicated region
    $region2: #{tpu_custom_call.1} parent=1 // pred_check
      _
    $region3: #{tpu_custom_call.1} parent=1 // pred_check_branch
      %16 = sbr.rel (0) target = $region5
    $region4: #{tpu_custom_call.1} parent=1 // pred_region
      _
    $region5: #{tpu_custom_call.1} parent=1 // pred_fallthru
      _
    // Predicated region
    $region6: #{tpu_custom_call.1} parent=1 // pred_check
      _
    $region7: #{tpu_custom_call.1} parent=1 // pred_check_branch
      %18 = sbr.rel (0) target = $region9
    $region8: #{tpu_custom_call.1} parent=1 // pred_region
      _
    $region9: #{tpu_custom_call.1} parent=1 // pred_fallthru
      _
    // Predicated region
    $region10: #{tpu_custom_call.1} parent=1 // pred_check
      _
    $region11: #{tpu_custom_call.1} parent=1 // pred_check_branch
      %20 = sbr.rel (0) target = $region13
    $region12: #{tpu_custom_call.1} parent=1 // pred_region
      _
    $region13: #{tpu_custom_call.1} parent=1 // pred_fallthru
      _
    // Predicated region
    $region14: #{tpu_custom_call.1} parent=1 // pred_check
      _
    $region15: #{tpu_custom_call.1} parent=1 // pred_check_branch
      %22 = sbr.rel (0) target = $region17
    $region16: #{tpu_custom_call.1} parent=1 // pred_region
      %s24 = ssub.s32 1024, 1024
      %25 = vsyncadd [#allocation3], %s24
      %s26 = sshll.u32 [#allocation2], 4
      %s27 = int_to_ptr.vmem [resolvable:$true] %s26
      %32 = dma.hbm_to_vmem [thread:$0]  %s3, 1024, %s27, [#allocation3], 64, 64, 4
    $region17: #{tpu_custom_call.1} parent=1 // pred_fallthru
      _
    // Predicated region
    $region18: #{tpu_custom_call.1} parent=1 // pred_check
      _
    $region19: #{tpu_custom_call.1} parent=1 // pred_check_branch
      %34 = sbr.rel (0) target = $region21
    $region20: #{tpu_custom_call.1} parent=1 // pred_region
      _
    $region21: #{tpu_custom_call.1} parent=1 // pred_fallthru
      _
    // Predicated region
    $region22: #{tpu_custom_call.1} parent=1 // pred_check
      _
    $region23: #{tpu_custom_call.1} parent=1 // pred_check_branch
      %36 = sbr.rel (0) target = $region25
    $region24: #{tpu_custom_call.1} parent=1 // pred_region
      %s38 = ssub.s32 1024, 1024
      %39 = vsyncadd [#allocation6], %s38
      %s40 = sshll.u32 [#allocation5], 4
      %s41 = int_to_ptr.vmem [resolvable:$true] %s40
      %46 = dma.hbm_to_vmem [thread:$0]  %s5, 1024, %s41, [#allocation6], 64, 64, 4
    $region25: #{tpu_custom_call.1} parent=1 // pred_fallthru
      _
    // Predicated region
    $region26: #{tpu_custom_call.1} parent=1 // pred_check
      _
    $region27: #{tpu_custom_call.1} parent=1 // pred_check_branch
      %48 = sbr.rel (0) target = $region29
    $region28: #{tpu_custom_call.1} parent=1 // pred_region
      _
    $region29: #{tpu_custom_call.1} parent=1 // pred_fallthru
      _
    // Predicated region
    $region30: #{tpu_custom_call.1} parent=1 // pred_check
      _
    $region31: #{tpu_custom_call.1} parent=1 // pred_check_branch
      %50 = sbr.rel (0) target = $region33
    $region32: #{tpu_custom_call.1} parent=1 // pred_region
      %51 = dma.done [#allocation3], 1024
    $region33: #{tpu_custom_call.1} parent=1 // pred_fallthru
      _
    // Predicated region
    $region34: #{tpu_custom_call.1} parent=1 // pred_check
      _
    $region35: #{tpu_custom_call.1} parent=1 // pred_check_branch
      %53 = sbr.rel (0) target = $region37
    $region36: #{tpu_custom_call.1} parent=1 // pred_region
      %54 = dma.done [#allocation6], 1024
    $region37: #{tpu_custom_call.1} parent=1 // pred_fallthru
      _
    %v56 = vld [vmem:[%s0] sm:$0xff]
    %v57 = vld [vmem:[%s1] sm:$0x3]
    %v58 = vunpack.c.l.bf16 %v57
    %60 = vset.pattern.permute.xlu0 0
    %61 = vperm.xlu0 %60, %v56
    %v62 = vpop.permute.xlu0 %61
    %v64 = vlaneseq
    %v65 = vshrl.u32 %v64, 7
    %v66 = vsub.s32 0, %v65
    %v67 = vrot.slane %v58, %v66
    %v68 = vmul.f32 %v62, %v67
    %69 = vset.pattern.permute.xlu0 1
    %70 = vperm.xlu0 %69, %v56
    %v71 = vpop.permute.xlu0 %70
    %v73 = vlaneseq
    %v74 = vshrl.u32 %v73, 7
    %v75 = vsub.s32 1, %v74
    %v76 = vrot.slane %v58, %v75
    %v77 = vmul.f32 %v71, %v76
    %v78 = vadd.f32 %v68, %v77
    %79 = vset.pattern.permute.xlu0 2
    %80 = vperm.xlu0 %79, %v56
    %v81 = vpop.permute.xlu0 %80
    %v83 = vlaneseq
    %v84 = vshrl.u32 %v83, 7
    %v85 = vsub.s32 2, %v84
    %v86 = vrot.slane %v58, %v85
    %v87 = vmul.f32 %v81, %v86
    %v88 = vadd.f32 %v78, %v87
    %89 = vset.pattern.permute.xlu0 3
    %90 = vperm.xlu0 %89, %v56
    %v91 = vpop.permute.xlu0 %90
    %v93 = vlaneseq
    %v94 = vshrl.u32 %v93, 7
    %v95 = vsub.s32 3, %v94
    %v96 = vrot.slane %v58, %v95
    %v97 = vmul.f32 %v91, %v96
    %v98 = vadd.f32 %v88, %v97
    %v99 = vld [vmem:[%s2] sm:$0x1]
    %v101 = vlaneseq
    %v102 = vshrl.u32 %v101, 7
    %v103 = vsub.s32 0, %v102
    %v104 = vrot.slane %v99, %v103
    %v106 = vadd.f32 %v98, %v104
    %v107 = vmax.f32 %v106, 0.0
    %v108 = vpack.c.bf16 %v107, %v107
    %v109 = vld [vmem:[#allocation2] sm:$0xf]
    %v110 = vld [vmem:[#allocation2 + $0x4] sm:$0xf]
    %v111 = vld [vmem:[#allocation2 + $0x8] sm:$0xf]
    %v112 = vld [vmem:[#allocation2 + $0xc] sm:$0xf]
    %v113 = vld [vmem:[#allocation2 + $0x10] sm:$0xf]
    %v114 = vld [vmem:[#allocation2 + $0x14] sm:$0xf]
    %v115 = vld [vmem:[#allocation2 + $0x18] sm:$0xf]
    %v116 = vld [vmem:[#allocation2 + $0x1c] sm:$0xf]
    %v117 = vld [vmem:[#allocation2 + $0x20] sm:$0xf]
    %v118 = vld [vmem:[#allocation2 + $0x24] sm:$0xf]
    %v119 = vld [vmem:[#allocation2 + $0x28] sm:$0xf]
    %v120 = vld [vmem:[#allocation2 + $0x2c] sm:$0xf]
    %v121 = vld [vmem:[#allocation2 + $0x30] sm:$0xf]
    %v122 = vld [vmem:[#allocation2 + $0x34] sm:$0xf]
    %v123 = vld [vmem:[#allocation2 + $0x38] sm:$0xf]
    %v124 = vld [vmem:[#allocation2 + $0x3c] sm:$0xf]
    %v125 = vld [vmem:[%s4] sm:$0x1]
    %v127 = vlaneseq
    %v128 = vshrl.u32 %v127, 7
    %v129 = vsub.s32 0, %v128
    %v130 = vrot.slane %v125, %v129
    %v148 = vunpack.c.l.b16 %v109
    %v149 = vunpack.c.l.b16 %v110
    %v150 = vunpack.c.l.b16 %v111
    %v151 = vunpack.c.l.b16 %v112
    %v152 = vunpack.c.l.b16 %v113
    %v153 = vunpack.c.l.b16 %v114
    %v154 = vunpack.c.l.b16 %v115
    %v155 = vunpack.c.l.b16 %v116
    %v156 = vunpack.c.l.b16 %v117
    %v157 = vunpack.c.l.b16 %v118
    %v158 = vunpack.c.l.b16 %v119
    %v159 = vunpack.c.l.b16 %v120
    %v160 = vunpack.c.l.b16 %v121
    %v161 = vunpack.c.l.b16 %v122
    %v162 = vunpack.c.l.b16 %v123
    %v163 = vunpack.c.l.b16 %v124
    %v164 = vpack.c.b16 %v149, %v148
    %v165 = vpack.c.b16 %v151, %v150
    %v166 = vpack.c.b16 %v153, %v152
    %v167 = vpack.c.b16 %v155, %v154
    %v168 = vpack.c.b16 %v157, %v156
    %v169 = vpack.c.b16 %v159, %v158
    %v170 = vpack.c.b16 %v161, %v160
    %v171 = vpack.c.b16 %v163, %v162
    %180 = vmatprep.subr.bf16.mxu0 0
    %181 = vmatpush1.bf16.msra.mxu0 %v164
    %182 = vmatprep.subr.bf16.mxu0 0
    %183 = vmatpush1.bf16.msra.mxu0 %v165
    %184 = vmatprep.subr.bf16.mxu0 0
    %185 = vmatpush1.bf16.msra.mxu0 %v166
    %186 = vmatprep.subr.bf16.mxu0 0
    %187 = vmatpush1.bf16.msra.mxu0 %v167
    %188 = vmatprep.subr.bf16.mxu0 0
    %189 = vmatpush1.bf16.msra.mxu0 %v168
    %190 = vmatprep.subr.bf16.mxu0 0
    %191 = vmatpush1.bf16.msra.mxu0 %v169
    %192 = vmatprep.subr.bf16.mxu0 0
    %193 = vmatpush1.bf16.msra.mxu0 %v170
    %194 = vmatprep.subr.bf16.mxu0 0
    %195 = vmatpush1.bf16.msra.mxu0 %v171
    %196 = vmatprep.subr.bf16.mxu0 0
    %197 = vmatpush1.bf16.msra.mxu0 0
    %198 = vmatprep.subr.bf16.mxu0 0
    %199 = vmatpush1.bf16.msra.mxu0 0
    %200 = vmatprep.subr.bf16.mxu0 0
    %201 = vmatpush1.bf16.msra.mxu0 0
    %202 = vmatprep.subr.bf16.mxu0 0
    %203 = vmatpush1.bf16.msra.mxu0 0
    %204 = vmatprep.subr.bf16.mxu0 0
    %205 = vmatpush1.bf16.msra.mxu0 0
    %206 = vmatprep.subr.bf16.mxu0 0
    %207 = vmatpush1.bf16.msra.mxu0 0
    %208 = vmatprep.subr.bf16.mxu0 0
    %209 = vmatpush1.bf16.msra.mxu0 0
    %210 = vmatprep.subr.bf16.mxu0 0
    %211 = vmatpush1.bf16.msra.mxu0 0
    %212 = vmatprep.mubr.bf16.mxu0 0
    %213 = vmatmul.mubr.bf16.gmra.mrb[0].mxu0 %v108
    %v214 = vpop.f32.mrb[0].mxu0
    %v215 = vadd.f32 %v130, %v214
    %v216 = vpop.f32.mrb[0].mxu0
    %v217 = vpop.f32.mrb[0].mxu0
    %v218 = vpop.f32.mrb[0].mxu0
    %219 = vdwg.mxu0
    %v220 = vmax.f32 %v215, 0.0
    %v221 = vpack.c.bf16 %v220, %v220
    %v222 = vld [vmem:[#allocation5] sm:$0xf]
    %v223 = vld [vmem:[#allocation5 + $0x4] sm:$0xf]
    %v224 = vld [vmem:[#allocation5 + $0x8] sm:$0xf]
    %v225 = vld [vmem:[#allocation5 + $0xc] sm:$0xf]
    %v226 = vld [vmem:[#allocation5 + $0x10] sm:$0xf]
    %v227 = vld [vmem:[#allocation5 + $0x14] sm:$0xf]
    %v228 = vld [vmem:[#allocation5 + $0x18] sm:$0xf]
    %v229 = vld [vmem:[#allocation5 + $0x1c] sm:$0xf]
    %v230 = vld [vmem:[#allocation5 + $0x20] sm:$0xf]
    %v231 = vld [vmem:[#allocation5 + $0x24] sm:$0xf]
    %v232 = vld [vmem:[#allocation5 + $0x28] sm:$0xf]
    %v233 = vld [vmem:[#allocation5 + $0x2c] sm:$0xf]
    %v234 = vld [vmem:[#allocation5 + $0x30] sm:$0xf]
    %v235 = vld [vmem:[#allocation5 + $0x34] sm:$0xf]
    %v236 = vld [vmem:[#allocation5 + $0x38] sm:$0xf]
    %v237 = vld [vmem:[#allocation5 + $0x3c] sm:$0xf]
    %v238 = vld [vmem:[%s6] sm:$0x1]
    %v240 = vlaneseq
    %v241 = vshrl.u32 %v240, 7
    %v242 = vsub.s32 0, %v241
    %v243 = vrot.slane %v238, %v242
    %v261 = vunpack.c.l.b16 %v222
    %v262 = vunpack.c.l.b16 %v223
    %v263 = vunpack.c.l.b16 %v224
    %v264 = vunpack.c.l.b16 %v225
    %v265 = vunpack.c.l.b16 %v226
    %v266 = vunpack.c.l.b16 %v227
    %v267 = vunpack.c.l.b16 %v228
    %v268 = vunpack.c.l.b16 %v229
    %v269 = vunpack.c.l.b16 %v230
    %v270 = vunpack.c.l.b16 %v231
    %v271 = vunpack.c.l.b16 %v232
    %v272 = vunpack.c.l.b16 %v233
    %v273 = vunpack.c.l.b16 %v234
    %v274 = vunpack.c.l.b16 %v235
    %v275 = vunpack.c.l.b16 %v236
    %v276 = vunpack.c.l.b16 %v237
    %v277 = vpack.c.b16 %v262, %v261
    %v278 = vpack.c.b16 %v264, %v263
    %v279 = vpack.c.b16 %v266, %v265
    %v280 = vpack.c.b16 %v268, %v267
    %v281 = vpack.c.b16 %v270, %v269
    %v282 = vpack.c.b16 %v272, %v271
    %v283 = vpack.c.b16 %v274, %v273
    %v284 = vpack.c.b16 %v276, %v275
    %293 = vmatprep.subr.bf16.mxu0 0
    %294 = vmatpush1.bf16.msra.mxu0 %v277
    %295 = vmatprep.subr.bf16.mxu0 0
    %296 = vmatpush1.bf16.msra.mxu0 %v278
    %297 = vmatprep.subr.bf16.mxu0 0
    %298 = vmatpush1.bf16.msra.mxu0 %v279
    %299 = vmatprep.subr.bf16.mxu0 0
    %300 = vmatpush1.bf16.msra.mxu0 %v280
    %301 = vmatprep.subr.bf16.mxu0 0
    %302 = vmatpush1.bf16.msra.mxu0 %v281
    %303 = vmatprep.subr.bf16.mxu0 0
    %304 = vmatpush1.bf16.msra.mxu0 %v282
    %305 = vmatprep.subr.bf16.mxu0 0
    %306 = vmatpush1.bf16.msra.mxu0 %v283
    %307 = vmatprep.subr.bf16.mxu0 0
    %308 = vmatpush1.bf16.msra.mxu0 %v284
    %309 = vmatprep.subr.bf16.mxu0 0
    %310 = vmatpush1.bf16.msra.mxu0 0
    %311 = vmatprep.subr.bf16.mxu0 0
    %312 = vmatpush1.bf16.msra.mxu0 0
    %313 = vmatprep.subr.bf16.mxu0 0
    %314 = vmatpush1.bf16.msra.mxu0 0
    %315 = vmatprep.subr.bf16.mxu0 0
    %316 = vmatpush1.bf16.msra.mxu0 0
    %317 = vmatprep.subr.bf16.mxu0 0
    %318 = vmatpush1.bf16.msra.mxu0 0
    %319 = vmatprep.subr.bf16.mxu0 0
    %320 = vmatpush1.bf16.msra.mxu0 0
    %321 = vmatprep.subr.bf16.mxu0 0
    %322 = vmatpush1.bf16.msra.mxu0 0
    %323 = vmatprep.subr.bf16.mxu0 0
    %324 = vmatpush1.bf16.msra.mxu0 0
    %325 = vmatprep.mubr.bf16.mxu0 0
    %326 = vmatmul.mubr.bf16.gmra.mrb[0].mxu0 %v221
    %v327 = vpop.f32.mrb[0].mxu0
    %v328 = vadd.f32 %v243, %v327
    %v329 = vpop.f32.mrb[0].mxu0
    %v330 = vpop.f32.mrb[0].mxu0
    %v331 = vpop.f32.mrb[0].mxu0
    %332 = vdwg.mxu0
    %333 = vst [vmem:[#allocation7] sm:$0xff] %v328
    // Predicated region
    $region38: #{tpu_custom_call.1} parent=1 // pred_check
      _
    $region39: #{tpu_custom_call.1} parent=1 // pred_check_branch
      %335 = sbr.rel (0) target = $region41
    $region40: #{tpu_custom_call.1} parent=1 // pred_region
      %s337 = ssub.s32 128, 128
      %338 = vsyncadd [#allocation4], %s337
      %s340 = sshll.u32 [#allocation7], 4
      %s341 = int_to_ptr.vmem [resolvable:$true] %s340
      %343 = dma.vmem_to_hbm [thread:$0]  %s341, 128, %s7, [#allocation4]
    $region41: #{tpu_custom_call.1} parent=1 // pred_fallthru
      _
    // Predicated region
    $region42: #{tpu_custom_call.1} parent=1 // pred_check
      _
    $region43: #{tpu_custom_call.1} parent=1 // pred_check_branch
      %345 = sbr.rel (0) target = $region45
    $region44: #{tpu_custom_call.1} parent=1 // pred_region
      %346 = dma.done [#allocation4], 128
    $region45: #{tpu_custom_call.1} parent=1 // pred_fallthru
      _
    %347 = vsyncpa [#allocation3], 1
    %348 = vsyncpa [#allocation6], 1
    %349 = vsyncpa [#allocation4], 1

</llo_original>
